<compile_context>
chip_gen: v5e
topology: v5e:2x2
jax: 0.10.0
libtpu: 0.0.40
codegen_flags: <defaults>
</compile_context>

<pallas_src>
import jax
import jax.numpy as jnp
from jax.experimental import pallas as pl
from jax.experimental.pallas import tpu as pltpu

LOG_SCALE_MAX = 2.0
LOG_SCALE_MIN = -10.0


def vae_kernel(x_ref, wenc_ref, benc_ref, wdec_ref, bdec_ref, eps_ref,
               xrec_ref, z_ref):
    """Fused VAE forward for one batch tile.

    x_ref    [TB, F]    input tile
    wenc_ref [F, 2H]    encoder weights (cols 0:H -> loc, cols H:2H -> log_scale)
    benc_ref [1, 2H]    encoder bias
    wdec_ref [H, F]     decoder weights
    bdec_ref [1, F]     decoder bias
    eps_ref  [TB, H]    standard-normal noise (reparameterization trick)
    outputs: xrec [TB, F], z [TB, 2H] = [loc | clipped log_scale]
    """
    H = eps_ref.shape[-1]
    x = x_ref[...]

    # --- encoder: one fused GEMM for both halves ---
    z = jnp.dot(x, wenc_ref[...], preferred_element_type=jnp.float32) + benc_ref[...]
    loc = z[:, :H]
    log_scale = jnp.clip(z[:, H:], LOG_SCALE_MIN, LOG_SCALE_MAX)

    # --- reparameterized sample: z_ = loc + exp(0.5*log_scale) * eps ---
    z_sample = loc + jnp.exp(0.5 * log_scale) * eps_ref[...]

    # --- decoder: sigmoid(z_ @ W_dec + b_dec) ---
    y = jnp.dot(z_sample, wdec_ref[...], preferred_element_type=jnp.float32) + bdec_ref[...]
    xrec_ref[...] = jax.nn.sigmoid(y)

    # --- combined stats slab: cols 0:H = loc, cols H:2H = clipped log_scale ---
    # purely elementwise masked clip (VPU) -> no lane shuffles for the store
    col = jax.lax.broadcasted_iota(jnp.int32, z.shape, 1)
    z_ref[...] = jnp.where(col < H, z, jnp.clip(z, LOG_SCALE_MIN, LOG_SCALE_MAX))


def vae_forward(x, params, eps, *, batch_tile=None):
    B, F = x.shape
    H = eps.shape[-1]
    w_enc, b_enc = params["w_enc"], params["b_enc"]
    w_dec, b_dec = params["w_dec"], params["b_dec"]

    # pick a batch tile; weights stay resident, x/eps/outputs are pipelined.
    # (size against 64 MiB VMEM on v7x when F/H/B get large)
    if batch_tile is None:
        batch_tile = min(B, 512)
    tb = min(batch_tile, B)
    grid = (pl.cdiv(B, tb),)

    # advisory cost hint so XLA can overlap this custom call with neighbors
    flops = 2 * B * F * (2 * H) + 2 * B * H * F
    bytes_accessed = 4 * (B * F + B * H                       # x, eps
                          + F * 2 * H + 2 * H + H * F + F     # weights/biases
                          + B * F + B * 2 * H)                # outputs
    cost = pl.CostEstimate(flops=flops,
                           transcendentals=B * H + B * F,     # exp + sigmoid
                           bytes_accessed=bytes_accessed)

    xrec, z = pl.pallas_call(
        vae_kernel,
        out_shape=(
            jax.ShapeDtypeStruct((B, F), jnp.float32),       # x_
            jax.ShapeDtypeStruct((B, 2 * H), jnp.float32),   # [loc | log_scale]
        ),
        grid_spec=pltpu.PrefetchScalarGridSpec(
            num_scalar_prefetch=0,
            grid=grid,
            in_specs=[
                pl.BlockSpec((tb, F), lambda i: (i, 0)),      # x       (pipelined)
                pl.BlockSpec((F, 2 * H), lambda i: (0, 0)),   # w_enc   (resident)
                pl.BlockSpec((1, 2 * H), lambda i: (0, 0)),   # b_enc   (resident)
                pl.BlockSpec((H, F), lambda i: (0, 0)),       # w_dec   (resident)
                pl.BlockSpec((1, F), lambda i: (0, 0)),       # b_dec   (resident)
                pl.BlockSpec((tb, H), lambda i: (i, 0)),      # eps     (pipelined)
            ],
            out_specs=[
                pl.BlockSpec((tb, F), lambda i: (i, 0)),      # x_
                pl.BlockSpec((tb, 2 * H), lambda i: (i, 0)),  # stats slab
            ],
        ),
        compiler_params=pltpu.CompilerParams(
            dimension_semantics=("parallel",),  # batch tiles -> both TCs on v7x
        ),
        cost_estimate=cost,
    )(x, w_enc, b_enc, w_dec, b_dec, eps)

    loc = z[:, :H]
    log_scale = z[:, H:]
    return xrec, loc, log_scale


def init_params(key, in_features, hid_features):
    """Deterministic parameter init (PyTorch-Linear-style uniform +/- 1/sqrt(fan_in)).

    Encoder is a single Linear(in_features, 2*hid_features) stored as one
    [F, 2H] matrix (cols 0:H -> loc, cols H:2H -> log_scale), matching the
    PyTorch module's column split of z.
    """
    k = jax.random.split(key, 4)
    lim_e = 1.0 / jnp.sqrt(float(in_features))
    lim_d = 1.0 / jnp.sqrt(float(hid_features))
    return {
        "w_enc": jax.random.uniform(k[0], (in_features, 2 * hid_features),
                                    jnp.float32, -lim_e, lim_e),
        "b_enc": jax.random.uniform(k[1], (1, 2 * hid_features),
                                    jnp.float32, -lim_e, lim_e),
        "w_dec": jax.random.uniform(k[2], (hid_features, in_features),
                                    jnp.float32, -lim_d, lim_d),
        "b_dec": jax.random.uniform(k[3], (1, in_features),
                                    jnp.float32, -lim_d, lim_d),
    }


if __name__ == "__main__":
    key = jax.random.PRNGKey(0)
    k_param, k_x, k_eps = jax.random.split(key, 3)

    batch, in_features, hid_features = 16, 32, 16

    params = init_params(k_param, in_features, hid_features)
    x = jax.random.uniform(k_x, (batch, in_features), jnp.float32)       # "image"-like input
    eps = jax.random.normal(k_eps, (batch, hid_features), jnp.float32)   # randn_like noise

    # batch_tile=8 -> grid of 2 steps, exercising the pipelined batch grid.
    x_rec, loc, log_scale = vae_forward(x, params, eps, batch_tile=8)
    jax.block_until_ready((x_rec, loc, log_scale))

    # reference check in plain JAX (same math as the PyTorch module)
    z_full = x @ params["w_enc"] + params["b_enc"]
    loc_ref = z_full[:, :hid_features]
    ls_ref = jnp.clip(z_full[:, hid_features:], LOG_SCALE_MIN, LOG_SCALE_MAX)
    z_samp = loc_ref + jnp.exp(0.5 * ls_ref) * eps
    xr_ref = jax.nn.sigmoid(z_samp @ params["w_dec"] + params["b_dec"])
    assert jnp.allclose(x_rec, xr_ref, atol=1e-5)
    assert jnp.allclose(loc, loc_ref, atol=1e-5)
    assert jnp.allclose(log_scale, ls_ref, atol=1e-5)

    print("KERNEL_OK")
</pallas_src>

<mosaic_0001>
module attributes {stable_mosaic.version = 11 : i64} {
  func.func @vae_kernel(%arg0: i32, %arg1: memref<8x32xf32, #tpu.memory_space<vmem>>, %arg2: memref<32x32xf32, #tpu.memory_space<vmem>>, %arg3: memref<1x32xf32, #tpu.memory_space<vmem>>, %arg4: memref<16x32xf32, #tpu.memory_space<vmem>>, %arg5: memref<1x32xf32, #tpu.memory_space<vmem>>, %arg6: memref<8x16xf32, #tpu.memory_space<vmem>>, %arg7: memref<8x32xf32, #tpu.memory_space<vmem>>, %arg8: memref<8x32xf32, #tpu.memory_space<vmem>>) attributes {dimension_semantics = [#tpu.dimension_semantics<parallel>], iteration_bounds = array<i64: 2>, scalar_prefetch = 0 : i64, scratch_operands = 0 : i64, tpu.core_type = #tpu.core_type<tc>, window_params = [{transform_indices = @transform_0, window_bounds = array<i64: 8, 32>}, {pipeline_mode = #tpu.pipeline_mode<synchronous>, transform_indices = @transform_1, window_bounds = array<i64: 32, 32>}, {pipeline_mode = #tpu.pipeline_mode<synchronous>, transform_indices = @transform_2, window_bounds = array<i64: 1, 32>}, {pipeline_mode = #tpu.pipeline_mode<synchronous>, transform_indices = @transform_3, window_bounds = array<i64: 16, 32>}, {pipeline_mode = #tpu.pipeline_mode<synchronous>, transform_indices = @transform_4, window_bounds = array<i64: 1, 32>}, {transform_indices = @transform_5, window_bounds = array<i64: 8, 16>}, {transform_indices = @transform_6, window_bounds = array<i64: 8, 32>}, {transform_indices = @transform_7, window_bounds = array<i64: 8, 32>}]} {
    %c0 = arith.constant 0 : index
    %c0_0 = arith.constant 0 : index
    %0 = vector.load %arg1[%c0, %c0_0] : memref<8x32xf32, #tpu.memory_space<vmem>>, vector<8x32xf32>
    %c0_1 = arith.constant 0 : index
    %c0_2 = arith.constant 0 : index
    %1 = vector.load %arg2[%c0_1, %c0_2] : memref<32x32xf32, #tpu.memory_space<vmem>>, vector<32x32xf32>
    %cst = arith.constant dense<0.000000e+00> : vector<8x32xf32>
    %2 = tpu.matmul %0, %1, %cst {dimension_numbers = #tpu.dot_dimension_numbers<[1], [0], [0], [1], [0, 0, 1, 1], [], []>} : vector<8x32xf32>, vector<32x32xf32>, vector<8x32xf32> -> vector<8x32xf32>
    %c0_3 = arith.constant 0 : index
    %c0_4 = arith.constant 0 : index
    %3 = vector.load %arg3[%c0_3, %c0_4] : memref<1x32xf32, #tpu.memory_space<vmem>>, vector<1x32xf32>
    %4 = vector.broadcast %3 : vector<1x32xf32> to vector<8x32xf32>
    %5 = arith.addf %2, %4 : vector<8x32xf32>
    %6 = vector.extract_strided_slice %5 {offsets = [0, 0], sizes = [8, 16], strides = [1, 1]} : vector<8x32xf32> to vector<8x16xf32>
    %7 = vector.extract_strided_slice %5 {offsets = [0, 16], sizes = [8, 16], strides = [1, 1]} : vector<8x32xf32> to vector<8x16xf32>
    %cst_5 = arith.constant -1.000000e+01 : f32
    %cst_6 = arith.constant 2.000000e+00 : f32
    %8 = vector.broadcast %cst_5 : f32 to vector<8x16xf32>
    %9 = arith.maximumf %8, %7 : vector<8x16xf32>
    %10 = vector.broadcast %cst_6 : f32 to vector<8x16xf32>
    %11 = arith.minimumf %10, %9 : vector<8x16xf32>
    %cst_7 = arith.constant 5.000000e-01 : f32
    %12 = vector.broadcast %cst_7 : f32 to vector<8x16xf32>
    %13 = arith.mulf %12, %11 : vector<8x16xf32>
    %14 = math.exp %13 : vector<8x16xf32>
    %c0_8 = arith.constant 0 : index
    %c0_9 = arith.constant 0 : index
    %15 = vector.load %arg6[%c0_8, %c0_9] : memref<8x16xf32, #tpu.memory_space<vmem>>, vector<8x16xf32>
    %16 = arith.mulf %14, %15 : vector<8x16xf32>
    %17 = arith.addf %6, %16 : vector<8x16xf32>
    %c0_10 = arith.constant 0 : index
    %c0_11 = arith.constant 0 : index
    %18 = vector.load %arg4[%c0_10, %c0_11] : memref<16x32xf32, #tpu.memory_space<vmem>>, vector<16x32xf32>
    %cst_12 = arith.constant dense<0.000000e+00> : vector<8x32xf32>
    %19 = tpu.matmul %17, %18, %cst_12 {dimension_numbers = #tpu.dot_dimension_numbers<[1], [0], [0], [1], [0, 0, 1, 1], [], []>} : vector<8x16xf32>, vector<16x32xf32>, vector<8x32xf32> -> vector<8x32xf32>
    %c0_13 = arith.constant 0 : index
    %c0_14 = arith.constant 0 : index
    %20 = vector.load %arg5[%c0_13, %c0_14] : memref<1x32xf32, #tpu.memory_space<vmem>>, vector<1x32xf32>
    %21 = vector.broadcast %20 : vector<1x32xf32> to vector<8x32xf32>
    %22 = arith.addf %19, %21 : vector<8x32xf32>
    %23 = arith.negf %22 : vector<8x32xf32>
    %24 = math.exp %23 : vector<8x32xf32>
    %cst_15 = arith.constant 1.000000e+00 : f32
    %25 = vector.broadcast %cst_15 : f32 to vector<8x32xf32>
    %26 = arith.addf %25, %24 : vector<8x32xf32>
    %27 = arith.divf %25, %26 : vector<8x32xf32>
    %c0_16 = arith.constant 0 : index
    %c0_17 = arith.constant 0 : index
    %28 = vector.load %arg7[%c0_16, %c0_17] : memref<8x32xf32, #tpu.memory_space<vmem>>, vector<8x32xf32>
    tpu.vector_store %arg7[%c0_16, %c0_17], %27 {strides = array<i32>} : memref<8x32xf32, #tpu.memory_space<vmem>>, vector<8x32xf32>,
    %29 = tpu.iota {dimensions = array<i32: 1>} : vector<8x32xi32>
    %c16_i32 = arith.constant 16 : i32
    %30 = vector.broadcast %c16_i32 : i32 to vector<8x32xi32>
    %31 = arith.cmpi slt, %29, %30 : vector<8x32xi32>
    %cst_18 = arith.constant -1.000000e+01 : f32
    %cst_19 = arith.constant 2.000000e+00 : f32
    %32 = vector.broadcast %cst_18 : f32 to vector<8x32xf32>
    %33 = arith.maximumf %32, %5 : vector<8x32xf32>
    %34 = vector.broadcast %cst_19 : f32 to vector<8x32xf32>
    %35 = arith.minimumf %34, %33 : vector<8x32xf32>
    %36 = arith.select %31, %5, %35 : vector<8x32xi1>, vector<8x32xf32>
    %c0_20 = arith.constant 0 : index
    %c0_21 = arith.constant 0 : index
    %37 = vector.load %arg8[%c0_20, %c0_21] : memref<8x32xf32, #tpu.memory_space<vmem>>, vector<8x32xf32>
    tpu.vector_store %arg8[%c0_20, %c0_21], %36 {strides = array<i32>} : memref<8x32xf32, #tpu.memory_space<vmem>>, vector<8x32xf32>,
    return
  }
  func.func @transform_0(%arg0: i32) -> (i32, i32) {
    %c0_i32 = arith.constant 0 : i32
    %c0_i32_0 = arith.constant 0 : i32
    return %arg0, %c0_i32 : i32, i32
  }
  func.func @transform_1(%arg0: i32) -> (i32, i32) {
    %c0_i32 = arith.constant 0 : i32
    %c0_i32_0 = arith.constant 0 : i32
    %c0_i32_1 = arith.constant 0 : i32
    return %c0_i32, %c0_i32_0 : i32, i32
  }
  func.func @transform_2(%arg0: i32) -> (i32, i32) {
    %c0_i32 = arith.constant 0 : i32
    %c0_i32_0 = arith.constant 0 : i32
    %c0_i32_1 = arith.constant 0 : i32
    return %c0_i32, %c0_i32_0 : i32, i32
  }
  func.func @transform_3(%arg0: i32) -> (i32, i32) {
    %c0_i32 = arith.constant 0 : i32
    %c0_i32_0 = arith.constant 0 : i32
    %c0_i32_1 = arith.constant 0 : i32
    return %c0_i32, %c0_i32_0 : i32, i32
  }
  func.func @transform_4(%arg0: i32) -> (i32, i32) {
    %c0_i32 = arith.constant 0 : i32
    %c0_i32_0 = arith.constant 0 : i32
    %c0_i32_1 = arith.constant 0 : i32
    return %c0_i32, %c0_i32_0 : i32, i32
  }
  func.func @transform_5(%arg0: i32) -> (i32, i32) {
    %c0_i32 = arith.constant 0 : i32
    %c0_i32_0 = arith.constant 0 : i32
    return %arg0, %c0_i32 : i32, i32
  }
  func.func @transform_6(%arg0: i32) -> (i32, i32) {
    %c0_i32 = arith.constant 0 : i32
    %c0_i32_0 = arith.constant 0 : i32
    return %arg0, %c0_i32 : i32, i32
  }
  func.func @transform_7(%arg0: i32) -> (i32, i32) {
    %c0_i32 = arith.constant 0 : i32
    %c0_i32_0 = arith.constant 0 : i32
    return %arg0, %c0_i32 : i32, i32
  }
}

</mosaic_0001>

<llo_original>
// kernel: tpu_custom_call.1
$region0: #{tpu_custom_call.1}
  #allocation0 [shape = 'u32[]', space=smem, size = 0x4, offset = 0x4, fixed_abs, tag = 'smem constant byte address 0x4 - core index']
  #allocation1 [shape = 'u32[72,128]{1,0:T(1,128)}', space=vmem, size = 0x9000, scoped, tag = 'internal scratch']
  %s0 = inlined_call_operand.hbm [shape: f32[16,32], index: 0, kind: input, shape index: {}]
  %s1 = inlined_call_operand.hbm [shape: f32[32,32], index: 1, kind: input, shape index: {}]
  %s2 = inlined_call_operand.vmem [shape: f32[1,32], index: 2, kind: input, shape index: {}]
  %s3 = inlined_call_operand.hbm [shape: f32[16,32], index: 3, kind: input, shape index: {}]
  %s4 = inlined_call_operand.vmem [shape: f32[1,32], index: 4, kind: input, shape index: {}]
  %s5 = inlined_call_operand.hbm [shape: f32[16,16], index: 5, kind: input, shape index: {}]
  %s6 = inlined_call_operand.hbm [shape: f32[16,32], index: 6, kind: output, shape index: {0}]
  %s7 = inlined_call_operand.hbm [shape: f32[16,32], index: 7, kind: output, shape index: {1}]
  %8 = xla_tuple %s6, %s7
  %s9 = sld [smem:[#allocation0]]
  $region81: #{tpu_custom_call.1} parent=0
    _
  %s11 = ssub.s32 1, %s9
  %s12 = scalar_select 0, %s11, %s9
  $region1: #{tpu_custom_call.1} parent=0
    #allocation2 [shape = 'u8[8192]{0}', space=vmem, size = 0x2000, scoped, tag = 'input window, operand 0']
    #allocation3 [shape = 's32[2]{0}', space=sflag, size = 0x8, scoped, tag = 'scoped memory for tpu_custom_call.1']
    #allocation4 [shape = 's32[2]{0}', space=sflag, size = 0x8, scoped, tag = 'scoped memory for tpu_custom_call.1']
    #allocation5 [shape = 'u8[16384]{0}', space=vmem, size = 0x4000, scoped, tag = 'input window, operand 1, single buffered']
    #allocation6 [shape = 's32[1]{0}', space=sflag, size = 0x4, scoped, tag = 'scoped memory for tpu_custom_call.1']
    #allocation7 [shape = 'u8[8192]{0}', space=vmem, size = 0x2000, scoped, tag = 'input window, operand 3, single buffered']
    #allocation8 [shape = 'u8[8192]{0}', space=vmem, size = 0x2000, scoped, tag = 'input window, operand 5']
    #allocation9 [shape = 's32[2]{0}', space=sflag, size = 0x8, scoped, tag = 'scoped memory for tpu_custom_call.1']
    #allocation10 [shape = 'u8[8192]{0}', space=vmem, size = 0x2000, scoped, tag = 'output window, operand 0']
    #allocation11 [shape = 'u8[8192]{0}', space=vmem, size = 0x2000, scoped, tag = 'output window, operand 1']
    #allocation12 [shape = 's32[2]{0}', space=sflag, size = 0x8, scoped, tag = 'scoped memory for tpu_custom_call.1']
    %13 = vsyncpa [#allocation3], 0
    %s14 = scalar_lea.sflag [#allocation3], 1
    %15 = vsyncpa %s14, 0
    %16 = vsyncpa [#allocation6], 0
    %17 = vsyncpa [#allocation9], 0
    %s18 = scalar_lea.sflag [#allocation9], 1
    %19 = vsyncpa %s18, 0
    %20 = vsyncpa [#allocation4], 0
    %s21 = scalar_lea.sflag [#allocation4], 1
    %22 = vsyncpa %s21, 0
    %23 = vsyncpa [#allocation12], 0
    %s24 = scalar_lea.sflag [#allocation12], 1
    %25 = vsyncpa %s24, 0
    loop: start=0, step=1, limit=4
    $region2: #{tpu_custom_call.1} parent=1 // loop_pre_header
      _
    $region3: #{tpu_custom_call.1} parent=1 // loop_header
      %s27 = sphi 0, %s31
      %p28 = scmp.ge.s32.totalorder %s27, 4
      %s37 = sphi 0, %s39
      %s40 = sphi 0, %s37
      %s41 = sphi 0, %s40
      %s57 = sphi 0, %s41
      %s61 = sphi 0, %s61
      %s63 = sphi 0, %s61
      %s64 = sphi 0, %s63
      %s78 = sphi 0, %s64
      %s82 = sphi 0, %s82
      %s84 = sphi 0, %s82
      %s85 = sphi 0, %s84
      %s99 = sphi 0, %s85
      %s103 = sphi 0, %s103
      %s105 = sphi 0, %s103
      %s106 = sphi 0, %s105
      %s120 = sphi 0, %s106
      %s124 = sphi 0, %s124
      %s126 = sphi 0, %s124
      %s127 = sphi 0, %s126
      %s141 = sphi 0, %s127
      %s147 = sphi 0, %s149
      %s150 = sphi 0, %s147
      %s151 = sphi 0, %s150
      %s167 = sphi 0, %s151
      %s173 = sphi 0, %s175
      %s176 = sphi 0, %s173
      %s177 = sphi 0, %s176
      %s193 = sphi 0, %s177
      %s199 = sphi 0, %s201
      %s202 = sphi 0, %s199
      %s203 = sphi 0, %s202
      %s219 = sphi 0, %s203
    $region4: #{tpu_custom_call.1} parent=1 // loop_header_branch
      %30 = sbr.rel (%p28) target = $region8
    $region5: #{tpu_custom_call.1} parent=1 // loop_body
      %s32 = ssub.s32 %s27, 1
      %s33 = ssub.s32 %s27, 2
      %s34 = sadd.s32 %s27, 1
      %s35 = ssub.s32 %s27, %s34
      %p36 = scmp.eq.s32.totalorder %s35, 0
      %s38 = sadd.s32 %s37, 1
      %s39 = scalar_select %p36, %s37, %s38
      %p42 = pneg %p36
      %p43 = scmp.eq.s32.totalorder %s27, 1
      %p44 = por %p42, %p43
      %p45 = scmp.ne.s32.totalorder %s37, %s40
      %p46 = scmp.eq.s32.totalorder %s27, 0
      %p47 = por %p45, %p46
      %p48 = scmp.ne.s32.totalorder %s37, %s40
      %p49 = scmp.eq.s32.totalorder %s32, 1
      %p50 = por %p48, %p49
      %p51 = scmp.ne.s32.totalorder %s40, %s41
      %p52 = scmp.eq.s32.totalorder %s32, 0
      %p53 = por %p51, %p52
      %p54 = scmp.ne.s32.totalorder %s40, %s41
      %p55 = scmp.eq.s32.totalorder %s33, 1
      %p56 = por %p54, %p55
      %p58 = scmp.ne.s32.totalorder %s41, %s57
      %p59 = scmp.eq.s32.totalorder %s33, 0
      %p60 = por %p58, %p59
      %s62 = sadd.s32 %s61, 1
      %p65 = scmp.eq.s32.totalorder %s27, 1
      %p66 = scmp.ne.s32.totalorder %s61, %s63
      %p67 = scmp.eq.s32.totalorder %s27, 0
      %p68 = por %p66, %p67
      %p69 = scmp.ne.s32.totalorder %s61, %s63
      %p70 = scmp.eq.s32.totalorder %s32, 1
      %p71 = por %p69, %p70
      %p72 = scmp.ne.s32.totalorder %s63, %s64
      %p73 = scmp.eq.s32.totalorder %s32, 0
      %p74 = por %p72, %p73
      %p75 = scmp.ne.s32.totalorder %s63, %s64
      %p76 = scmp.eq.s32.totalorder %s33, 1
      %p77 = por %p75, %p76
      %p79 = scmp.ne.s32.totalorder %s64, %s78
      %p80 = scmp.eq.s32.totalorder %s33, 0
      %p81 = por %p79, %p80
      %s83 = sadd.s32 %s82, 1
      %p86 = scmp.eq.s32.totalorder %s27, 1
      %p87 = scmp.ne.s32.totalorder %s82, %s84
      %p88 = scmp.eq.s32.totalorder %s27, 0
      %p89 = por %p87, %p88
      %p90 = scmp.ne.s32.totalorder %s82, %s84
      %p91 = scmp.eq.s32.totalorder %s32, 1
      %p92 = por %p90, %p91
      %p93 = scmp.ne.s32.totalorder %s84, %s85
      %p94 = scmp.eq.s32.totalorder %s32, 0
      %p95 = por %p93, %p94
      %p96 = scmp.ne.s32.totalorder %s84, %s85
      %p97 = scmp.eq.s32.totalorder %s33, 1
      %p98 = por %p96, %p97
      %p100 = scmp.ne.s32.totalorder %s85, %s99
      %p101 = scmp.eq.s32.totalorder %s33, 0
      %p102 = por %p100, %p101
      %s104 = sadd.s32 %s103, 1
      %p107 = scmp.eq.s32.totalorder %s27, 1
      %p108 = scmp.ne.s32.totalorder %s103, %s105
      %p109 = scmp.eq.s32.totalorder %s27, 0
      %p110 = por %p108, %p109
      %p111 = scmp.ne.s32.totalorder %s103, %s105
      %p112 = scmp.eq.s32.totalorder %s32, 1
      %p113 = por %p111, %p112
      %p114 = scmp.ne.s32.totalorder %s105, %s106
      %p115 = scmp.eq.s32.totalorder %s32, 0
      %p116 = por %p114, %p115
      %p117 = scmp.ne.s32.totalorder %s105, %s106
      %p118 = scmp.eq.s32.totalorder %s33, 1
      %p119 = por %p117, %p118
      %p121 = scmp.ne.s32.totalorder %s106, %s120
      %p122 = scmp.eq.s32.totalorder %s33, 0
      %p123 = por %p121, %p122
      %s125 = sadd.s32 %s124, 1
      %p128 = scmp.eq.s32.totalorder %s27, 1
      %p129 = scmp.ne.s32.totalorder %s124, %s126
      %p130 = scmp.eq.s32.totalorder %s27, 0
      %p131 = por %p129, %p130
      %p132 = scmp.ne.s32.totalorder %s124, %s126
      %p133 = scmp.eq.s32.totalorder %s32, 1
      %p134 = por %p132, %p133
      %p135 = scmp.ne.s32.totalorder %s126, %s127
      %p136 = scmp.eq.s32.totalorder %s32, 0
      %p137 = por %p135, %p136
      %p138 = scmp.ne.s32.totalorder %s126, %s127
      %p139 = scmp.eq.s32.totalorder %s33, 1
      %p140 = por %p138, %p139
      %p142 = scmp.ne.s32.totalorder %s127, %s141
      %p143 = scmp.eq.s32.totalorder %s33, 0
      %p144 = por %p142, %p143
      %s145 = ssub.s32 %s27, %s34
      %p146 = scmp.eq.s32.totalorder %s145, 0
      %s148 = sadd.s32 %s147, 1
      %s149 = scalar_select %p146, %s147, %s148
      %p152 = pneg %p146
      %p153 = scmp.eq.s32.totalorder %s27, 1
      %p154 = por %p152, %p153
      %p155 = scmp.ne.s32.totalorder %s147, %s150
      %p156 = scmp.eq.s32.totalorder %s27, 0
      %p157 = por %p155, %p156
      %p158 = scmp.ne.s32.totalorder %s147, %s150
      %p159 = scmp.eq.s32.totalorder %s32, 1
      %p160 = por %p158, %p159
      %p161 = scmp.ne.s32.totalorder %s150, %s151
      %p162 = scmp.eq.s32.totalorder %s32, 0
      %p163 = por %p161, %p162
      %p164 = scmp.ne.s32.totalorder %s150, %s151
      %p165 = scmp.eq.s32.totalorder %s33, 1
      %p166 = por %p164, %p165
      %p168 = scmp.ne.s32.totalorder %s151, %s167
      %p169 = scmp.eq.s32.totalorder %s33, 0
      %p170 = por %p168, %p169
      %s171 = ssub.s32 %s27, %s34
      %p172 = scmp.eq.s32.totalorder %s171, 0
      %s174 = sadd.s32 %s173, 1
      %s175 = scalar_select %p172, %s173, %s174
      %p178 = pneg %p172
      %p179 = scmp.eq.s32.totalorder %s27, 1
      %p180 = por %p178, %p179
      %p181 = scmp.ne.s32.totalorder %s173, %s176
      %p182 = scmp.eq.s32.totalorder %s27, 0
      %p183 = por %p181, %p182
      %p184 = scmp.ne.s32.totalorder %s173, %s176
      %p185 = scmp.eq.s32.totalorder %s32, 1
      %p186 = por %p184, %p185
      %p187 = scmp.ne.s32.totalorder %s176, %s177
      %p188 = scmp.eq.s32.totalorder %s32, 0
      %p189 = por %p187, %p188
      %p190 = scmp.ne.s32.totalorder %s176, %s177
      %p191 = scmp.eq.s32.totalorder %s33, 1
      %p192 = por %p190, %p191
      %p194 = scmp.ne.s32.totalorder %s177, %s193
      %p195 = scmp.eq.s32.totalorder %s33, 0
      %p196 = por %p194, %p195
      %s197 = ssub.s32 %s27, %s34
      %p198 = scmp.eq.s32.totalorder %s197, 0
      %s200 = sadd.s32 %s199, 1
      %s201 = scalar_select %p198, %s199, %s200
      %p204 = pneg %p198
      %p205 = scmp.eq.s32.totalorder %s27, 1
      %p206 = por %p204, %p205
      %p207 = scmp.ne.s32.totalorder %s199, %s202
      %p208 = scmp.eq.s32.totalorder %s27, 0
      %p209 = por %p207, %p208
      %p210 = scmp.ne.s32.totalorder %s199, %s202
      %p211 = scmp.eq.s32.totalorder %s32, 1
      %p212 = por %p210, %p211
      %p213 = scmp.ne.s32.totalorder %s202, %s203
      %p214 = scmp.eq.s32.totalorder %s32, 0
      %p215 = por %p213, %p214
      %p216 = scmp.ne.s32.totalorder %s202, %s203
      %p217 = scmp.eq.s32.totalorder %s33, 1
      %p218 = por %p216, %p217
      %p220 = scmp.ne.s32.totalorder %s203, %s219
      %p221 = scmp.eq.s32.totalorder %s33, 0
      %p222 = por %p220, %p221
      %p223 = scmp.le.s32.totalorder 1, %s27
      %p224 = scmp.lt.s32.totalorder %s27, 3
      %p225 = pnand %p223, %p224
      %p226 = pneg %p225
      // Predicated region
      $region9: #{tpu_custom_call.1} parent=5 // pred_check
        _
      $region10: #{tpu_custom_call.1} parent=5 // pred_check_branch
        %228 = sbr.rel (%p225) target = $region12
      $region11: #{tpu_custom_call.1} parent=5 // pred_region
        %s229 = ssub.s32 %s27, 1
        // Predicated region
        $region13: #{tpu_custom_call.1} parent=11 // pred_check
          %p230 = pneg %p74
        $region14: #{tpu_custom_call.1} parent=11 // pred_check_branch
          %232 = sbr.rel (%p230) target = $region16
        $region15: #{tpu_custom_call.1} parent=11 // pred_region
          %234 = vsyncadd [#allocation6], 0
          %s235 = sshll.u32 %s1, 4
          %s236 = int_to_ptr.hbm [resolvable:$true] %s235
          %s237 = sshll.u32 [#allocation5], 4
          %s238 = int_to_ptr.vmem [resolvable:$true] %s237
          %243 = dma.hbm_to_vmem [thread:$0]  %s236, 512, %s238, [#allocation6], 128, 128, 8
        $region16: #{tpu_custom_call.1} parent=11 // pred_fallthru
          _
        // Predicated region
        $region17: #{tpu_custom_call.1} parent=11 // pred_check
          %p244 = pneg %p95
        $region18: #{tpu_custom_call.1} parent=11 // pred_check_branch
          %246 = sbr.rel (%p244) target = $region20
        $region19: #{tpu_custom_call.1} parent=11 // pred_region
          _
        $region20: #{tpu_custom_call.1} parent=11 // pred_fallthru
          _
        // Predicated region
        $region21: #{tpu_custom_call.1} parent=11 // pred_check
          %p247 = pneg %p116
        $region22: #{tpu_custom_call.1} parent=11 // pred_check_branch
          %249 = sbr.rel (%p247) target = $region24
        $region23: #{tpu_custom_call.1} parent=11 // pred_region
          %251 = vsyncadd [#allocation6], 0
          %s252 = sshll.u32 %s3, 4
          %s253 = int_to_ptr.hbm [resolvable:$true] %s252
          %s254 = sshll.u32 [#allocation7], 4
          %s255 = int_to_ptr.vmem [resolvable:$true] %s254
          %260 = dma.hbm_to_vmem [thread:$0]  %s253, 256, %s255, [#allocation6], 128, 128, 8
        $region24: #{tpu_custom_call.1} parent=11 // pred_fallthru
          _
        // Predicated region
        $region25: #{tpu_custom_call.1} parent=11 // pred_check
          %p261 = pneg %p137
        $region26: #{tpu_custom_call.1} parent=11 // pred_check_branch
          %263 = sbr.rel (%p261) target = $region28
        $region27: #{tpu_custom_call.1} parent=11 // pred_region
          _
        $region28: #{tpu_custom_call.1} parent=11 // pred_fallthru
          _
      $region12: #{tpu_custom_call.1} parent=5 // pred_fallthru
        _
      %p264 = scmp.lt.s32.totalorder %s27, 2
      // Predicated region
      $region29: #{tpu_custom_call.1} parent=5 // pred_check
        %p265 = pneg %p264
      $region30: #{tpu_custom_call.1} parent=5 // pred_check_branch
        %267 = sbr.rel (%p265) target = $region32
      $region31: #{tpu_custom_call.1} parent=5 // pred_region
        // Predicated region
        $region33: #{tpu_custom_call.1} parent=31 // pred_check
          %p268 = pneg %p47
        $region34: #{tpu_custom_call.1} parent=31 // pred_check_branch
          %270 = sbr.rel (%p268) target = $region36
        $region35: #{tpu_custom_call.1} parent=31 // pred_region
          %s271 = sand.u32 %s37, 1
          %s272 = scalar_lea.sflag [#allocation3], %s271
          %s273 = sand.u32 %s37, 1
          %s274 = smul.addr %s273, 8
          %s275 = scalar_lea.vmem [#allocation2], %s274
          %277 = vsyncadd %s272, 0
          %s278 = smul.addr %s27, 8
          %s279 = scalar_lea.hbm %s0, %s278
          %s281 = sshll.u32 %s279, 4
          %s282 = int_to_ptr.hbm [resolvable:$true] %s281
          %s283 = sshll.u32 %s275, 4
          %s284 = int_to_ptr.vmem [resolvable:$true] %s283
          %286 = dma.hbm_to_vmem [thread:$0]  %s282, 128, %s284, %s272
        $region36: #{tpu_custom_call.1} parent=31 // pred_fallthru
          _
        // Predicated region
        $region37: #{tpu_custom_call.1} parent=31 // pred_check
          %p287 = pneg %p157
        $region38: #{tpu_custom_call.1} parent=31 // pred_check_branch
          %289 = sbr.rel (%p287) target = $region40
        $region39: #{tpu_custom_call.1} parent=31 // pred_region
          %s290 = sand.u32 %s147, 1
          %s291 = scalar_lea.sflag [#allocation9], %s290
          %s292 = sand.u32 %s147, 1
          %s293 = smul.addr %s292, 8
          %s294 = scalar_lea.vmem [#allocation8], %s293
          %296 = vsyncadd %s291, 0
          %s297 = smul.addr %s27, 8
          %s298 = scalar_lea.hbm %s5, %s297
          %s300 = sshll.u32 %s298, 4
          %s301 = int_to_ptr.hbm [resolvable:$true] %s300
          %s302 = sshll.u32 %s294, 4
          %s303 = int_to_ptr.vmem [resolvable:$true] %s302
          %305 = dma.hbm_to_vmem [thread:$0]  %s301, 128, %s303, %s291
        $region40: #{tpu_custom_call.1} parent=31 // pred_fallthru
          _
      $region32: #{tpu_custom_call.1} parent=5 // pred_fallthru
        _
      %p306 = scmp.le.s32.totalorder 1, %s27
      %p307 = scmp.lt.s32.totalorder %s27, 3
      %p308 = pnand %p306, %p307
      %p309 = pneg %p308
      // Predicated region
      $region41: #{tpu_custom_call.1} parent=5 // pred_check
        _
      $region42: #{tpu_custom_call.1} parent=5 // pred_check_branch
        %311 = sbr.rel (%p308) target = $region44
      $region43: #{tpu_custom_call.1} parent=5 // pred_region
        %s312 = ssub.s32 %s27, 1
        %s313 = sand.u32 %s40, 1
        %s314 = scalar_lea.sflag [#allocation3], %s313
        %s315 = sand.u32 %s40, 1
        %s316 = smul.addr %s315, 8
        %s317 = scalar_lea.vmem [#allocation2], %s316
        // Predicated region
        $region45: #{tpu_custom_call.1} parent=43 // pred_check
          %p318 = pneg %p53
        $region46: #{tpu_custom_call.1} parent=43 // pred_check_branch
          %320 = sbr.rel (%p318) target = $region48
        $region47: #{tpu_custom_call.1} parent=43 // pred_region
          %322 = dma.done %s314, 128
        $region48: #{tpu_custom_call.1} parent=43 // pred_fallthru
          _
        // Predicated region
        $region49: #{tpu_custom_call.1} parent=43 // pred_check
          %p323 = pneg %p74
        $region50: #{tpu_custom_call.1} parent=43 // pred_check_branch
          %325 = sbr.rel (%p323) target = $region52
        $region51: #{tpu_custom_call.1} parent=43 // pred_region
          %327 = dma.done [#allocation6], 512
        $region52: #{tpu_custom_call.1} parent=43 // pred_fallthru
          _
        // Predicated region
        $region53: #{tpu_custom_call.1} parent=43 // pred_check
          %p328 = pneg %p116
        $region54: #{tpu_custom_call.1} parent=43 // pred_check_branch
          %330 = sbr.rel (%p328) target = $region56
        $region55: #{tpu_custom_call.1} parent=43 // pred_region
          %332 = dma.done [#allocation6], 256
        $region56: #{tpu_custom_call.1} parent=43 // pred_fallthru
          _
        %s333 = sand.u32 %s150, 1
        %s334 = scalar_lea.sflag [#allocation9], %s333
        %s335 = sand.u32 %s150, 1
        %s336 = smul.addr %s335, 8
        %s337 = scalar_lea.vmem [#allocation8], %s336
        // Predicated region
        $region57: #{tpu_custom_call.1} parent=43 // pred_check
          %p338 = pneg %p163
        $region58: #{tpu_custom_call.1} parent=43 // pred_check_branch
          %340 = sbr.rel (%p338) target = $region60
        $region59: #{tpu_custom_call.1} parent=43 // pred_region
          %342 = dma.done %s334, 128
        $region60: #{tpu_custom_call.1} parent=43 // pred_fallthru
          _
        %s343 = sand.u32 %s40, 1
        %s344 = scalar_lea.sflag [#allocation3], %s343
        %s345 = sand.u32 %s40, 1
        %s346 = smul.addr %s345, 8
        %s347 = scalar_lea.vmem [#allocation2], %s346
        %p348 = pneg %p53
        %p349 = pneg %p50
        %p350 = pneg %p74
        %p351 = pneg %p71
        %p352 = pneg %p95
        %p353 = pneg %p92
        %p354 = pneg %p116
        %p355 = pneg %p113
        %p356 = pneg %p137
        %p357 = pneg %p134
        %s358 = sand.u32 %s150, 1
        %s359 = scalar_lea.sflag [#allocation9], %s358
        %s360 = sand.u32 %s150, 1
        %s361 = smul.addr %s360, 8
        %s362 = scalar_lea.vmem [#allocation8], %s361
        %p363 = pneg %p163
        %p364 = pneg %p160
        %p365 = pneg %p189
        %p366 = pneg %p186
        %s367 = sand.u32 %s176, 1
        %s368 = scalar_lea.sflag [#allocation4], %s367
        %s369 = sand.u32 %s176, 1
        %s370 = smul.addr %s369, 8
        %s371 = scalar_lea.vmem [#allocation10], %s370
        %p372 = pneg %p215
        %p373 = pneg %p212
        %s374 = sand.u32 %s202, 1
        %s375 = scalar_lea.sflag [#allocation12], %s374
        %s376 = sand.u32 %s202, 1
        %s377 = smul.addr %s376, 8
        %s378 = scalar_lea.vmem [#allocation11], %s377
        %v379 = vld [vmem:[%s317] sm:$0xff]
        %v380 = vld [vmem:[#allocation5] sm:$0xff]
        %v381 = vld [vmem:[#allocation5 + $0x8] sm:$0xff]
        %v382 = vld [vmem:[#allocation5 + $0x10] sm:$0xff]
        %v383 = vld [vmem:[#allocation5 + $0x18] sm:$0xff]
        %v384 = vld [vmem:[%s2] sm:$0x1]
        %v386 = vperm.slane %v384, 0
        %vm388 = vcmask 261120
        %v390 = vsel %vm388, %v379, 0
        %392 = vmatpush.msra.mxu0 0.0
        %393 = vmatpush.msra.mxu0 0.0
        %394 = vmatpush.msra.mxu0 0.0
        %395 = vmatpush.msra.mxu0 0.0
        %396 = vmatpush.msra.mxu0 0.0
        %397 = vmatpush.msra.mxu0 0.0
        %398 = vmatpush.msra.mxu0 0.0
        %399 = vmatpush.msra.mxu0 0.0
        %400 = vmatpush.msra.mxu0 0.0
        %401 = vmatpush.msra.mxu0 0.0
        %402 = vmatpush.msra.mxu0 0.0
        %403 = vmatpush.msra.mxu0 0.0
        %404 = vmatpush.msra.mxu0 %v383
        %405 = vmatpush.msra.mxu0 %v382
        %406 = vmatpush.msra.mxu0 %v381
        %407 = vmatpush.msra.mxu0 %v380
        %408 = vmatmul.f32.gmra.mxu0 %v390
        %v409 = vpop.f32.mrf.mxu0
        %v410 = vadd.f32 %v386, %v409
        %411 = vdwg.mxu0
        %v412 = vmax.f32 %v410, -10.0
        %v413 = vmin.f32 %v412, 2.0
        %v414 = vmul.f32 %v413, 0.5
        %v415 = vmul.f32 %v414, 1.442695
        %v416 = vpow.pop %v415
        %v417 = vld [vmem:[%s337] sm:$0xff]
        %419 = vrot.lane.b32.xlu0 %v417, 16
        %v420 = vpop.permute.xlu0 %419
        %v422 = vmul.f32 %v416, %v420
        %424 = vrot.lane.b32.xlu0 %v422, 112
        %v425 = vpop.permute.xlu0 %424
        %v427 = vadd.f32 %v410, %v425
        %v428 = vld [vmem:[#allocation7] sm:$0xff]
        %v429 = vld [vmem:[#allocation7 + $0x8] sm:$0xff]
        %v430 = vld [vmem:[%s4] sm:$0x1]
        %v432 = vperm.slane %v430, 0
        %vm434 = vcmask 130048
        %v436 = vsel %vm434, %v427, 0
        %438 = vmatpush.msra.mxu0 0.0
        %439 = vmatpush.msra.mxu0 0.0
        %440 = vmatpush.msra.mxu0 0.0
        %441 = vmatpush.msra.mxu0 0.0
        %442 = vmatpush.msra.mxu0 0.0
        %443 = vmatpush.msra.mxu0 0.0
        %444 = vmatpush.msra.mxu0 0.0
        %445 = vmatpush.msra.mxu0 0.0
        %446 = vmatpush.msra.mxu0 0.0
        %447 = vmatpush.msra.mxu0 0.0
        %448 = vmatpush.msra.mxu0 0.0
        %449 = vmatpush.msra.mxu0 0.0
        %450 = vmatpush.msra.mxu0 0.0
        %451 = vmatpush.msra.mxu0 0.0
        %452 = vmatpush.msra.mxu0 %v429
        %453 = vmatpush.msra.mxu0 %v428
        %454 = vmatmul.f32.gmra.mxu0 %v436
        %v455 = vpop.f32.mrf.mxu0
        %v456 = vadd.f32 %v432, %v455
        %457 = vdwg.mxu0
        %v458 = vxor.u32 %v456, 2147483648
        %v459 = vmul.f32 %v458, 1.442695
        %v460 = vpow.pop %v459
        %v461 = vadd.f32 %v460, 1.0
        %v462 = vrcp.pop %v461
        %v463 = vmul.f32 %v461, %v462
        %v464 = vsub.f32 1.0, %v463
        %v465 = vmul.f32 %v462, %v464
        %v466 = vadd.f32 %v462, %v465
        %vm467 = vweird.f32 %v461
        %vm468 = vweird.f32 %v462
        %vm469 = vmor %vm467, %vm468
        %v470 = vsel %vm469, %v462, %v466
        %v471 = vand.u32 2147483647, %v461
        %vm472 = vcmp.eq.f32.partialorder %v471, 8.507059e+37
        %v473 = vand.u32 %v461, 2147483648
        %v474 = vor.u32 1.1754944e-38, %v473
        %v475 = vsel %vm472, %v474, %v470
        %v476 = vmul.f32 1.0, %v475
        %477 = vst.msk [vmem:[%s371] sm:$0xff] %vm388, %v476
        %v478 = vlaneseq
        %v479 = vand.u32 %v478, 127
        %vm480 = vcmp.lt.s32.totalorder %v479, 16
        %v481 = vsel %vm480, %v410, %v413
        %482 = vst.msk [vmem:[%s378] sm:$0xff] %vm388, %v481
        %s483 = sand.u32 %s176, 1
        %s484 = scalar_lea.sflag [#allocation4], %s483
        %s485 = sand.u32 %s176, 1
        %s486 = smul.addr %s485, 8
        %s487 = scalar_lea.vmem [#allocation10], %s486
        %s488 = sand.u32 %s202, 1
        %s489 = scalar_lea.sflag [#allocation12], %s488
        %s490 = sand.u32 %s202, 1
        %s491 = smul.addr %s490, 8
        %s492 = scalar_lea.vmem [#allocation11], %s491
        // Predicated region
        $region61: #{tpu_custom_call.1} parent=43 // pred_check
          %p493 = pneg %p186
        $region62: #{tpu_custom_call.1} parent=43 // pred_check_branch
          %495 = sbr.rel (%p493) target = $region64
        $region63: #{tpu_custom_call.1} parent=43 // pred_region
          %497 = vsyncadd %s484, 0
          %s498 = smul.addr %s32, 8
          %s499 = scalar_lea.hbm %s6, %s498
          %s501 = sshll.u32 %s487, 4
          %s502 = int_to_ptr.vmem [resolvable:$true] %s501
          %s503 = sshll.u32 %s499, 4
          %s504 = int_to_ptr.hbm [resolvable:$true] %s503
          %506 = dma.vmem_to_hbm [thread:$0]  %s502, 128, %s504, %s484
        $region64: #{tpu_custom_call.1} parent=43 // pred_fallthru
          _
        // Predicated region
        $region65: #{tpu_custom_call.1} parent=43 // pred_check
          %p507 = pneg %p212
        $region66: #{tpu_custom_call.1} parent=43 // pred_check_branch
          %509 = sbr.rel (%p507) target = $region68
        $region67: #{tpu_custom_call.1} parent=43 // pred_region
          %511 = vsyncadd %s489, 0
          %s512 = smul.addr %s32, 8
          %s513 = scalar_lea.hbm %s7, %s512
          %s515 = sshll.u32 %s492, 4
          %s516 = int_to_ptr.vmem [resolvable:$true] %s515
          %s517 = sshll.u32 %s513, 4
          %s518 = int_to_ptr.hbm [resolvable:$true] %s517
          %520 = dma.vmem_to_hbm [thread:$0]  %s516, 128, %s518, %s489
        $region68: #{tpu_custom_call.1} parent=43 // pred_fallthru
          _
      $region44: #{tpu_custom_call.1} parent=5 // pred_fallthru
        _
      %p521 = scmp.le.s32.totalorder 2, %s27
      // Predicated region
      $region69: #{tpu_custom_call.1} parent=5 // pred_check
        %p522 = pneg %p521
      $region70: #{tpu_custom_call.1} parent=5 // pred_check_branch
        %524 = sbr.rel (%p522) target = $region72
      $region71: #{tpu_custom_call.1} parent=5 // pred_region
        %s525 = ssub.s32 %s27, 2
        // Predicated region
        $region73: #{tpu_custom_call.1} parent=71 // pred_check
          %p526 = pneg %p192
        $region74: #{tpu_custom_call.1} parent=71 // pred_check_branch
          %528 = sbr.rel (%p526) target = $region76
        $region75: #{tpu_custom_call.1} parent=71 // pred_region
          %s529 = sand.u32 %s177, 1
          %s530 = scalar_lea.sflag [#allocation4], %s529
          %s531 = sand.u32 %s177, 1
          %s532 = smul.addr %s531, 8
          %s533 = scalar_lea.vmem [#allocation10], %s532
          %535 = dma.done %s530, 128
        $region76: #{tpu_custom_call.1} parent=71 // pred_fallthru
          _
        // Predicated region
        $region77: #{tpu_custom_call.1} parent=71 // pred_check
          %p536 = pneg %p218
        $region78: #{tpu_custom_call.1} parent=71 // pred_check_branch
          %538 = sbr.rel (%p536) target = $region80
        $region79: #{tpu_custom_call.1} parent=71 // pred_region
          %s539 = sand.u32 %s203, 1
          %s540 = scalar_lea.sflag [#allocation12], %s539
          %s541 = sand.u32 %s203, 1
          %s542 = smul.addr %s541, 8
          %s543 = scalar_lea.vmem [#allocation11], %s542
          %545 = dma.done %s540, 128
        $region80: #{tpu_custom_call.1} parent=71 // pred_fallthru
          _
      $region72: #{tpu_custom_call.1} parent=5 // pred_fallthru
        _
    $region6: #{tpu_custom_call.1} parent=1 // loop_footer
      %s31 = sadd.s32 1, %s27
    $region7: #{tpu_custom_call.1} parent=1 // loop_footer_branch
      %26 = sbr.rel target = $region3
    $region8: #{tpu_custom_call.1} parent=1 // loop_exit
      _
    %546 = vsyncpa [#allocation3], 1
    %s547 = scalar_lea.sflag [#allocation3], 1
    %548 = vsyncpa %s547, 1
    %549 = vsyncpa [#allocation6], 1
    %550 = vsyncpa [#allocation9], 1
    %s551 = scalar_lea.sflag [#allocation9], 1
    %552 = vsyncpa %s551, 1
    %553 = vsyncpa [#allocation4], 1
    %s554 = scalar_lea.sflag [#allocation4], 1
    %555 = vsyncpa %s554, 1
    %556 = vsyncpa [#allocation12], 1
    %s557 = scalar_lea.sflag [#allocation12], 1
    %558 = vsyncpa %s557, 1

</llo_original>
